<compile_context>
chip_gen: v7x
topology: tpu7x:2x2x1
jax: 0.10.0
libtpu: 0.0.40
codegen_flags: <defaults>
</compile_context>

<pallas_src>
import jax
import jax.numpy as jnp
from jax.experimental import pallas as pl
from jax.experimental.pallas import tpu as pltpu

KSIZE = 3  # kernel_size=3 -> padding=(k-1)//2=1 (same-size output at stride 1)
NTAPS = KSIZE * KSIZE


def _pick_cout_tile(cout):
    """Full Cout when small; otherwise the largest multiple-of-8 divisor <= 256."""
    if cout <= 256:
        return cout
    for t in range(256, 7, -8):
        if cout % t == 0:
            return t
    return cout  # fallback: keep the whole Cout resident


def conv3x3_relu_pallas(x_nchw, weight_oihw, bias):
    """x: (N, Cin, H, W) f32, weight: (Cout, Cin, 3, 3) f32 (PyTorch OIHW),
    bias: (Cout,) f32  ->  (N, Cout, H, W) f32  (3x3 conv, pad=1, stride=1, + ReLU)."""
    N, Cin, H, W = x_nchw.shape
    Cout, wcin, kh_, kw_ = weight_oihw.shape
    assert (kh_, kw_) == (KSIZE, KSIZE) and wcin == Cin
    HW = H * W

    # --- wrapper-side prep: NO big HBM intermediates -------------------------
    # (N, Cin, H, W) -> (N, Cin, H*W): contiguous reshape == bitcast, no HBM pass.
    x_flat = x_nchw.reshape(N, Cin, HW).astype(jnp.float32)
    # Per-tap weight slabs, tap-major: w9[t] = weight[:, :, kh, kw], t = kh*3 + kw.
    w9 = jnp.transpose(weight_oihw.astype(jnp.float32), (2, 3, 0, 1)).reshape(
        NTAPS, Cout, Cin)
    b2 = bias.astype(jnp.float32).reshape(Cout, 1)

    # Per-tap border-validity masks over flattened pixels: (9, 1, H*W) of {0,1}.
    hh = jnp.arange(H, dtype=jnp.int32).reshape(H, 1)
    ww = jnp.arange(W, dtype=jnp.int32).reshape(1, W)
    mask_list = []
    for t in range(NTAPS):
        dkh, dkw = divmod(t, KSIZE)
        valid = ((hh + dkh - 1 >= 0) & (hh + dkh - 1 < H)
                 & (ww + dkw - 1 >= 0) & (ww + dkw - 1 < W))
        mask_list.append(valid.astype(jnp.float32).reshape(1, HW))
    masks = jnp.stack(mask_list, axis=0)                  # (9, 1, HW), tiny

    tco = _pick_cout_tile(Cout)
    assert Cout % tco == 0
    grid = (N, Cout // tco)

    # --- generation-aware VMEM budget (weights/bias/masks accounted) ---------
    need = 4 * (2 * Cin * HW            # input block, double-buffered
                + 2 * tco * HW          # output block, double-buffered
                + 2 * NTAPS * HW        # masks
                + 2 * NTAPS * tco * Cin # weights
                + 2 * tco               # bias
                + (2 * Cin + 2 * tco) * HW)  # live temps (plane, rolled tap, acc)
    try:
        cap = pltpu.get_tpu_info().vmem_capacity_bytes    # 128 MiB v5e/v6e, 64 MiB v7x
    except Exception:
        cap = 64 << 20
    vmem_limit = int(max(32 << 20, min(int(0.75 * cap), max(48 << 20, 2 * need))))

    # --- kernel: in-register im2col via lane rolls + masks, 9 fused matmuls --
    def kernel(w_ref, b_ref, m_ref, x_ref, o_ref):
        # w_ref: (9, TCout, Cin)   per-tap weight slabs
        # b_ref: (TCout, 1)        bias
        # m_ref: (9, 1, HW)        per-tap 0/1 validity masks
        # x_ref: (Cin, HW)         one image plane (batch dim squeezed)
        # o_ref: (TCout, HW)       lane-dense output tile
        xv = x_ref[...]
        acc = jnp.zeros(o_ref.shape, jnp.float32)
        for t in range(NTAPS):
            kh, kw = divmod(t, KSIZE)
            d = (kh - 1) * W + (kw - 1)          # flat pixel offset of this tap
            if d == 0:
                tap = xv                          # center tap: no shift, all-valid
            else:
                # rolled[p] = xv[(p + d) mod HW]; wrapped/out-of-image reads are
                # exactly the positions zeroed by the mask.
                tap = pltpu.roll(xv, shift=(-d) % HW, axis=1)
                tap = tap * m_ref[t]              # (Cin, HW) * (1, HW)
            acc = acc + jnp.dot(w_ref[t], tap,
                                preferred_element_type=jnp.float32)
        acc = acc + b_ref[...]                    # (TCout, 1) broadcasts over pixels
        o_ref[...] = jnp.maximum(acc, 0.0).astype(o_ref.dtype)

    out_flat = pl.pallas_call(
        kernel,
        out_shape=jax.ShapeDtypeStruct((N, Cout, HW), jnp.float32),
        grid=grid,
        in_specs=[
            pl.BlockSpec((NTAPS, tco, Cin), lambda n, co: (0, co, 0)),
            pl.BlockSpec((tco, 1), lambda n, co: (co, 0)),
            pl.BlockSpec((NTAPS, 1, HW), lambda n, co: (0, 0, 0)),
            pl.BlockSpec((None, Cin, HW), lambda n, co: (n, 0, 0)),   # batch squeezed
        ],
        out_specs=pl.BlockSpec((None, tco, HW), lambda n, co: (n, co, 0)),
        compiler_params=pltpu.CompilerParams(
            dimension_semantics=("parallel", "parallel"),
            vmem_limit_bytes=vmem_limit),
    )(w9, b2, masks, x_flat)

    # (N, Cout, H*W) -> (N, Cout, H, W): contiguous reshape, no transpose/HBM pass.
    return out_flat.reshape(N, Cout, H, W)


def _reference(x_nchw, weight_oihw, bias):
    """Pure-JAX reference (same math as nn.Conv2d(pad=1) + ReLU)."""
    y = jax.lax.conv_general_dilated(
        x_nchw, weight_oihw, window_strides=(1, 1), padding=((1, 1), (1, 1)),
        dimension_numbers=("NCHW", "OIHW", "NCHW"))
    return jnp.maximum(y + bias[None, :, None, None], 0.0)


if __name__ == "__main__":
    # Small shapes consistent with the module: batch=2, in_ch=4, out_ch=8, 16x16.
    N, Cin, Cout, H, W = 2, 4, 8, 16, 16

    key = jax.random.PRNGKey(0)
    kx, kw_, kb = jax.random.split(key, 3)

    # Round test data to bf16-representable values so the Pallas path and the XLA
    # reference agree to tight f32 tolerance regardless of MXU matmul pass count.
    def _bf16_exact(a):
        return a.astype(jnp.bfloat16).astype(jnp.float32)

    x = _bf16_exact(jax.random.normal(kx, (N, Cin, H, W), dtype=jnp.float32))
    weight = _bf16_exact(
        0.1 * jax.random.normal(kw_, (Cout, Cin, KSIZE, KSIZE), dtype=jnp.float32))
    bias = _bf16_exact(0.1 * jax.random.normal(kb, (Cout,), dtype=jnp.float32))

    out = jax.block_until_ready(conv3x3_relu_pallas(x, weight, bias))
    ref = _reference(x, weight, bias)

    assert out.shape == (N, Cout, H, W)
    assert jnp.allclose(out, ref, atol=1e-3, rtol=1e-3), \
        float(jnp.max(jnp.abs(out - ref)))

    print("KERNEL_OK")
</pallas_src>

<mosaic_0001>
module attributes {stable_mosaic.version = 11 : i64} {
  func.func @kernel(%arg0: i32, %arg1: i32, %arg2: memref<9x8x4xf32, #tpu.memory_space<vmem>>, %arg3: memref<8x1xf32, #tpu.memory_space<vmem>>, %arg4: memref<9x1x256xf32, #tpu.memory_space<vmem>>, %arg5: memref<1x4x256xf32, #tpu.memory_space<vmem>>, %arg6: memref<1x8x256xf32, #tpu.memory_space<vmem>>) attributes {dimension_semantics = [#tpu.dimension_semantics<parallel>, #tpu.dimension_semantics<parallel>], iteration_bounds = array<i64: 2, 1>, scalar_prefetch = 0 : i64, scratch_operands = 0 : i64, tpu.core_type = #tpu.core_type<tc>, window_params = [{transform_indices = @transform_0, window_bounds = array<i64: 9, 8, 4>}, {transform_indices = @transform_1, window_bounds = array<i64: 8, 1>}, {pipeline_mode = #tpu.pipeline_mode<synchronous>, transform_indices = @transform_2, window_bounds = array<i64: 9, 1, 256>}, {transform_indices = @transform_3, window_bounds = array<i64: 1, 4, 256>}, {transform_indices = @transform_4, window_bounds = array<i64: 1, 8, 256>}]} {
    %c0 = arith.constant 0 : index
    %c0_0 = arith.constant 0 : index
    %c0_1 = arith.constant 0 : index
    %0 = vector.load %arg5[%c0, %c0_0, %c0_1] : memref<1x4x256xf32, #tpu.memory_space<vmem>>, vector<1x4x256xf32>
    %1 = vector.shape_cast %0 : vector<1x4x256xf32> to vector<4x256xf32>
    %cst = arith.constant 0.000000e+00 : f32
    %2 = vector.broadcast %cst : f32 to vector<8x256xf32>
    %c17_i32 = arith.constant 17 : i32
    %3 = tpu.dynamic_rotate %1 by %c17_i32 dim 1 : vector<4x256xf32>, i32 -> vector<4x256xf32>
    %c0_2 = arith.constant 0 : index
    %c0_3 = arith.constant 0 : index
    %c0_4 = arith.constant 0 : index
    %4 = vector.load %arg4[%c0_2, %c0_3, %c0_4] : memref<9x1x256xf32, #tpu.memory_space<vmem>>, vector<1x1x256xf32>
    %5 = vector.shape_cast %4 : vector<1x1x256xf32> to vector<1x256xf32>
    %6 = vector.broadcast %5 : vector<1x256xf32> to vector<4x256xf32>
    %7 = arith.mulf %3, %6 : vector<4x256xf32>
    %c0_5 = arith.constant 0 : index
    %c0_6 = arith.constant 0 : index
    %c0_7 = arith.constant 0 : index
    %8 = vector.load %arg2[%c0_5, %c0_6, %c0_7] : memref<9x8x4xf32, #tpu.memory_space<vmem>>, vector<1x8x4xf32>
    %9 = vector.shape_cast %8 : vector<1x8x4xf32> to vector<8x4xf32>
    %cst_8 = arith.constant dense<0.000000e+00> : vector<8x256xf32>
    %10 = tpu.matmul %9, %7, %cst_8 {dimension_numbers = #tpu.dot_dimension_numbers<[1], [0], [0], [1], [0, 0, 1, 1], [], []>} : vector<8x4xf32>, vector<4x256xf32>, vector<8x256xf32> -> vector<8x256xf32>
    %11 = arith.addf %2, %10 : vector<8x256xf32>
    %c16_i32 = arith.constant 16 : i32
    %12 = tpu.dynamic_rotate %1 by %c16_i32 dim 1 : vector<4x256xf32>, i32 -> vector<4x256xf32>
    %c1 = arith.constant 1 : index
    %c0_9 = arith.constant 0 : index
    %c0_10 = arith.constant 0 : index
    %13 = vector.load %arg4[%c1, %c0_9, %c0_10] : memref<9x1x256xf32, #tpu.memory_space<vmem>>, vector<1x1x256xf32>
    %14 = vector.shape_cast %13 : vector<1x1x256xf32> to vector<1x256xf32>
    %15 = vector.broadcast %14 : vector<1x256xf32> to vector<4x256xf32>
    %16 = arith.mulf %12, %15 : vector<4x256xf32>
    %c1_11 = arith.constant 1 : index
    %c0_12 = arith.constant 0 : index
    %c0_13 = arith.constant 0 : index
    %17 = vector.load %arg2[%c1_11, %c0_12, %c0_13] : memref<9x8x4xf32, #tpu.memory_space<vmem>>, vector<1x8x4xf32>
    %18 = vector.shape_cast %17 : vector<1x8x4xf32> to vector<8x4xf32>
    %cst_14 = arith.constant dense<0.000000e+00> : vector<8x256xf32>
    %19 = tpu.matmul %18, %16, %cst_14 {dimension_numbers = #tpu.dot_dimension_numbers<[1], [0], [0], [1], [0, 0, 1, 1], [], []>} : vector<8x4xf32>, vector<4x256xf32>, vector<8x256xf32> -> vector<8x256xf32>
    %20 = arith.addf %11, %19 : vector<8x256xf32>
    %c15_i32 = arith.constant 15 : i32
    %21 = tpu.dynamic_rotate %1 by %c15_i32 dim 1 : vector<4x256xf32>, i32 -> vector<4x256xf32>
    %c2 = arith.constant 2 : index
    %c0_15 = arith.constant 0 : index
    %c0_16 = arith.constant 0 : index
    %22 = vector.load %arg4[%c2, %c0_15, %c0_16] : memref<9x1x256xf32, #tpu.memory_space<vmem>>, vector<1x1x256xf32>
    %23 = vector.shape_cast %22 : vector<1x1x256xf32> to vector<1x256xf32>
    %24 = vector.broadcast %23 : vector<1x256xf32> to vector<4x256xf32>
    %25 = arith.mulf %21, %24 : vector<4x256xf32>
    %c2_17 = arith.constant 2 : index
    %c0_18 = arith.constant 0 : index
    %c0_19 = arith.constant 0 : index
    %26 = vector.load %arg2[%c2_17, %c0_18, %c0_19] : memref<9x8x4xf32, #tpu.memory_space<vmem>>, vector<1x8x4xf32>
    %27 = vector.shape_cast %26 : vector<1x8x4xf32> to vector<8x4xf32>
    %cst_20 = arith.constant dense<0.000000e+00> : vector<8x256xf32>
    %28 = tpu.matmul %27, %25, %cst_20 {dimension_numbers = #tpu.dot_dimension_numbers<[1], [0], [0], [1], [0, 0, 1, 1], [], []>} : vector<8x4xf32>, vector<4x256xf32>, vector<8x256xf32> -> vector<8x256xf32>
    %29 = arith.addf %20, %28 : vector<8x256xf32>
    %c1_i32 = arith.constant 1 : i32
    %30 = tpu.dynamic_rotate %1 by %c1_i32 dim 1 : vector<4x256xf32>, i32 -> vector<4x256xf32>
    %c3 = arith.constant 3 : index
    %c0_21 = arith.constant 0 : index
    %c0_22 = arith.constant 0 : index
    %31 = vector.load %arg4[%c3, %c0_21, %c0_22] : memref<9x1x256xf32, #tpu.memory_space<vmem>>, vector<1x1x256xf32>
    %32 = vector.shape_cast %31 : vector<1x1x256xf32> to vector<1x256xf32>
    %33 = vector.broadcast %32 : vector<1x256xf32> to vector<4x256xf32>
    %34 = arith.mulf %30, %33 : vector<4x256xf32>
    %c3_23 = arith.constant 3 : index
    %c0_24 = arith.constant 0 : index
    %c0_25 = arith.constant 0 : index
    %35 = vector.load %arg2[%c3_23, %c0_24, %c0_25] : memref<9x8x4xf32, #tpu.memory_space<vmem>>, vector<1x8x4xf32>
    %36 = vector.shape_cast %35 : vector<1x8x4xf32> to vector<8x4xf32>
    %cst_26 = arith.constant dense<0.000000e+00> : vector<8x256xf32>
    %37 = tpu.matmul %36, %34, %cst_26 {dimension_numbers = #tpu.dot_dimension_numbers<[1], [0], [0], [1], [0, 0, 1, 1], [], []>} : vector<8x4xf32>, vector<4x256xf32>, vector<8x256xf32> -> vector<8x256xf32>
    %38 = arith.addf %29, %37 : vector<8x256xf32>
    %c4 = arith.constant 4 : index
    %c0_27 = arith.constant 0 : index
    %c0_28 = arith.constant 0 : index
    %39 = vector.load %arg2[%c4, %c0_27, %c0_28] : memref<9x8x4xf32, #tpu.memory_space<vmem>>, vector<1x8x4xf32>
    %40 = vector.shape_cast %39 : vector<1x8x4xf32> to vector<8x4xf32>
    %cst_29 = arith.constant dense<0.000000e+00> : vector<8x256xf32>
    %41 = tpu.matmul %40, %1, %cst_29 {dimension_numbers = #tpu.dot_dimension_numbers<[1], [0], [0], [1], [0, 0, 1, 1], [], []>} : vector<8x4xf32>, vector<4x256xf32>, vector<8x256xf32> -> vector<8x256xf32>
    %42 = arith.addf %38, %41 : vector<8x256xf32>
    %c255_i32 = arith.constant 255 : i32
    %43 = tpu.dynamic_rotate %1 by %c255_i32 dim 1 : vector<4x256xf32>, i32 -> vector<4x256xf32>
    %c5 = arith.constant 5 : index
    %c0_30 = arith.constant 0 : index
    %c0_31 = arith.constant 0 : index
    %44 = vector.load %arg4[%c5, %c0_30, %c0_31] : memref<9x1x256xf32, #tpu.memory_space<vmem>>, vector<1x1x256xf32>
    %45 = vector.shape_cast %44 : vector<1x1x256xf32> to vector<1x256xf32>
    %46 = vector.broadcast %45 : vector<1x256xf32> to vector<4x256xf32>
    %47 = arith.mulf %43, %46 : vector<4x256xf32>
    %c5_32 = arith.constant 5 : index
    %c0_33 = arith.constant 0 : index
    %c0_34 = arith.constant 0 : index
    %48 = vector.load %arg2[%c5_32, %c0_33, %c0_34] : memref<9x8x4xf32, #tpu.memory_space<vmem>>, vector<1x8x4xf32>
    %49 = vector.shape_cast %48 : vector<1x8x4xf32> to vector<8x4xf32>
    %cst_35 = arith.constant dense<0.000000e+00> : vector<8x256xf32>
    %50 = tpu.matmul %49, %47, %cst_35 {dimension_numbers = #tpu.dot_dimension_numbers<[1], [0], [0], [1], [0, 0, 1, 1], [], []>} : vector<8x4xf32>, vector<4x256xf32>, vector<8x256xf32> -> vector<8x256xf32>
    %51 = arith.addf %42, %50 : vector<8x256xf32>
    %c241_i32 = arith.constant 241 : i32
    %52 = tpu.dynamic_rotate %1 by %c241_i32 dim 1 : vector<4x256xf32>, i32 -> vector<4x256xf32>
    %c6 = arith.constant 6 : index
    %c0_36 = arith.constant 0 : index
    %c0_37 = arith.constant 0 : index
    %53 = vector.load %arg4[%c6, %c0_36, %c0_37] : memref<9x1x256xf32, #tpu.memory_space<vmem>>, vector<1x1x256xf32>
    %54 = vector.shape_cast %53 : vector<1x1x256xf32> to vector<1x256xf32>
    %55 = vector.broadcast %54 : vector<1x256xf32> to vector<4x256xf32>
    %56 = arith.mulf %52, %55 : vector<4x256xf32>
    %c6_38 = arith.constant 6 : index
    %c0_39 = arith.constant 0 : index
    %c0_40 = arith.constant 0 : index
    %57 = vector.load %arg2[%c6_38, %c0_39, %c0_40] : memref<9x8x4xf32, #tpu.memory_space<vmem>>, vector<1x8x4xf32>
    %58 = vector.shape_cast %57 : vector<1x8x4xf32> to vector<8x4xf32>
    %cst_41 = arith.constant dense<0.000000e+00> : vector<8x256xf32>
    %59 = tpu.matmul %58, %56, %cst_41 {dimension_numbers = #tpu.dot_dimension_numbers<[1], [0], [0], [1], [0, 0, 1, 1], [], []>} : vector<8x4xf32>, vector<4x256xf32>, vector<8x256xf32> -> vector<8x256xf32>
    %60 = arith.addf %51, %59 : vector<8x256xf32>
    %c240_i32 = arith.constant 240 : i32
    %61 = tpu.dynamic_rotate %1 by %c240_i32 dim 1 : vector<4x256xf32>, i32 -> vector<4x256xf32>
    %c7 = arith.constant 7 : index
    %c0_42 = arith.constant 0 : index
    %c0_43 = arith.constant 0 : index
    %62 = vector.load %arg4[%c7, %c0_42, %c0_43] : memref<9x1x256xf32, #tpu.memory_space<vmem>>, vector<1x1x256xf32>
    %63 = vector.shape_cast %62 : vector<1x1x256xf32> to vector<1x256xf32>
    %64 = vector.broadcast %63 : vector<1x256xf32> to vector<4x256xf32>
    %65 = arith.mulf %61, %64 : vector<4x256xf32>
    %c7_44 = arith.constant 7 : index
    %c0_45 = arith.constant 0 : index
    %c0_46 = arith.constant 0 : index
    %66 = vector.load %arg2[%c7_44, %c0_45, %c0_46] : memref<9x8x4xf32, #tpu.memory_space<vmem>>, vector<1x8x4xf32>
    %67 = vector.shape_cast %66 : vector<1x8x4xf32> to vector<8x4xf32>
    %cst_47 = arith.constant dense<0.000000e+00> : vector<8x256xf32>
    %68 = tpu.matmul %67, %65, %cst_47 {dimension_numbers = #tpu.dot_dimension_numbers<[1], [0], [0], [1], [0, 0, 1, 1], [], []>} : vector<8x4xf32>, vector<4x256xf32>, vector<8x256xf32> -> vector<8x256xf32>
    %69 = arith.addf %60, %68 : vector<8x256xf32>
    %c239_i32 = arith.constant 239 : i32
    %70 = tpu.dynamic_rotate %1 by %c239_i32 dim 1 : vector<4x256xf32>, i32 -> vector<4x256xf32>
    %c8 = arith.constant 8 : index
    %c0_48 = arith.constant 0 : index
    %c0_49 = arith.constant 0 : index
    %71 = vector.load %arg4[%c8, %c0_48, %c0_49] : memref<9x1x256xf32, #tpu.memory_space<vmem>>, vector<1x1x256xf32>
    %72 = vector.shape_cast %71 : vector<1x1x256xf32> to vector<1x256xf32>
    %73 = vector.broadcast %72 : vector<1x256xf32> to vector<4x256xf32>
    %74 = arith.mulf %70, %73 : vector<4x256xf32>
    %c8_50 = arith.constant 8 : index
    %c0_51 = arith.constant 0 : index
    %c0_52 = arith.constant 0 : index
    %75 = vector.load %arg2[%c8_50, %c0_51, %c0_52] : memref<9x8x4xf32, #tpu.memory_space<vmem>>, vector<1x8x4xf32>
    %76 = vector.shape_cast %75 : vector<1x8x4xf32> to vector<8x4xf32>
    %cst_53 = arith.constant dense<0.000000e+00> : vector<8x256xf32>
    %77 = tpu.matmul %76, %74, %cst_53 {dimension_numbers = #tpu.dot_dimension_numbers<[1], [0], [0], [1], [0, 0, 1, 1], [], []>} : vector<8x4xf32>, vector<4x256xf32>, vector<8x256xf32> -> vector<8x256xf32>
    %78 = arith.addf %69, %77 : vector<8x256xf32>
    %c0_54 = arith.constant 0 : index
    %c0_55 = arith.constant 0 : index
    %79 = vector.load %arg3[%c0_54, %c0_55] : memref<8x1xf32, #tpu.memory_space<vmem>>, vector<8x1xf32>
    %80 = vector.broadcast %79 : vector<8x1xf32> to vector<8x256xf32>
    %81 = arith.addf %78, %80 : vector<8x256xf32>
    %cst_56 = arith.constant 0.000000e+00 : f32
    %82 = vector.broadcast %cst_56 : f32 to vector<8x256xf32>
    %83 = arith.maximumf %81, %82 : vector<8x256xf32>
    %c0_57 = arith.constant 0 : index
    %c0_58 = arith.constant 0 : index
    %c0_59 = arith.constant 0 : index
    %84 = vector.load %arg6[%c0_57, %c0_58, %c0_59] : memref<1x8x256xf32, #tpu.memory_space<vmem>>, vector<1x8x256xf32>
    %85 = vector.shape_cast %84 : vector<1x8x256xf32> to vector<8x256xf32>
    %86 = vector.shape_cast %83 : vector<8x256xf32> to vector<1x8x256xf32>
    tpu.vector_store %arg6[%c0_57, %c0_58, %c0_59], %86 {strides = array<i32>} : memref<1x8x256xf32, #tpu.memory_space<vmem>>, vector<1x8x256xf32>,
    return
  }
  func.func @transform_0(%arg0: i32, %arg1: i32) -> (i32, i32, i32) {
    %c0_i32 = arith.constant 0 : i32
    %c0_i32_0 = arith.constant 0 : i32
    %c0_i32_1 = arith.constant 0 : i32
    return %c0_i32, %arg1, %c0_i32_0 : i32, i32, i32
  }
  func.func @transform_1(%arg0: i32, %arg1: i32) -> (i32, i32) {
    %c0_i32 = arith.constant 0 : i32
    %c0_i32_0 = arith.constant 0 : i32
    return %arg1, %c0_i32 : i32, i32
  }
  func.func @transform_2(%arg0: i32, %arg1: i32) -> (i32, i32, i32) {
    %c0_i32 = arith.constant 0 : i32
    %c0_i32_0 = arith.constant 0 : i32
    %c0_i32_1 = arith.constant 0 : i32
    %c0_i32_2 = arith.constant 0 : i32
    return %c0_i32, %c0_i32_0, %c0_i32_1 : i32, i32, i32
  }
  func.func @transform_3(%arg0: i32, %arg1: i32) -> (i32, i32, i32) {
    %c0_i32 = arith.constant 0 : i32
    %c0_i32_0 = arith.constant 0 : i32
    %c0_i32_1 = arith.constant 0 : i32
    return %arg0, %c0_i32, %c0_i32_0 : i32, i32, i32
  }
  func.func @transform_4(%arg0: i32, %arg1: i32) -> (i32, i32, i32) {
    %c0_i32 = arith.constant 0 : i32
    %c0_i32_0 = arith.constant 0 : i32
    return %arg0, %arg1, %c0_i32 : i32, i32, i32
  }
}

</mosaic_0001>

<llo_original>
// kernel: tpu_custom_call.1
$region0: #{tpu_custom_call.1}
  #allocation0 [shape = 'u32[]', space=smem, size = 0x4, offset = 0x4, fixed_abs, tag = 'smem constant byte address 0x4 - core index']
  #allocation1 [shape = 'u32[144,128]{1,0:T(1,128)}', space=vmem, size = 0x12000, scoped, tag = 'internal scratch']
  %s0 = inlined_call_operand.vmem [shape: f32[9,8,4], index: 0, kind: input, shape index: {}]
  %s1 = inlined_call_operand.vmem [shape: f32[8,1], index: 1, kind: input, shape index: {}]
  %s2 = inlined_call_operand.vmem [shape: f32[9,1,256], index: 2, kind: input, shape index: {}]
  %s3 = inlined_call_operand.vmem [shape: f32[2,4,256], index: 3, kind: input, shape index: {}]
  %s4 = inlined_call_operand.hbm [shape: f32[2,8,256], index: 4, kind: output, shape index: {}]
  %s5 = sld [smem:[#allocation0]]
  $region49: #{tpu_custom_call.1} parent=0
    _
  %s7 = ssub.s32 1, %s5
  %s8 = scalar_select 0, %s7, %s5
  $region1: #{tpu_custom_call.1} parent=0
    #allocation2 [shape = 'u8[16384]{0}', space=vmem, size = 0x4000, scoped, tag = 'output window, operand 0']
    #allocation3 [shape = 's32[2]{0}', space=sflag, size = 0x8, scoped, tag = 'scoped memory for tpu_custom_call.1']
    %9 = vsyncpa [#allocation3], 0
    %s10 = scalar_lea.sflag [#allocation3], 1
    %11 = vsyncpa %s10, 0
    loop: start=0, step=1, limit=4
    $region2: #{tpu_custom_call.1} parent=1 // loop_pre_header
      _
    $region3: #{tpu_custom_call.1} parent=1 // loop_header
      %s13 = sphi 0, %s17
      %p14 = scmp.ge.s32.totalorder %s13, 4
      %s20 = sphi 0, %s32
      %s21 = sphi 0, %s28
      %s22 = sphi 0, %s20
      %s23 = sphi 0, %s21
      %s24 = sphi 0, %s22
      %s25 = sphi 0, %s23
      %s35 = sphi 0, %s37
      %s38 = sphi 0, %s35
      %s39 = sphi 0, %s38
      %s55 = sphi 0, %s39
      %s61 = sphi 0, %s63
      %s64 = sphi 0, %s61
      %s65 = sphi 0, %s64
      %s81 = sphi 0, %s65
      %s85 = sphi 0, %s85
      %s87 = sphi 0, %s85
      %s88 = sphi 0, %s87
      %s102 = sphi 0, %s88
      %s108 = sphi 0, %s110
      %s111 = sphi 0, %s108
      %s112 = sphi 0, %s111
      %s128 = sphi 0, %s112
      %s136 = sphi 0, %s138
      %s139 = sphi 0, %s136
      %s140 = sphi 0, %s139
      %s156 = sphi 0, %s140
    $region4: #{tpu_custom_call.1} parent=1 // loop_header_branch
      %16 = sbr.rel (%p14) target = $region8
    $region5: #{tpu_custom_call.1} parent=1 // loop_body
      %s18 = ssub.s32 %s13, 1
      %s19 = ssub.s32 %s13, 2
      %s26 = sadd.s32 1, %s21
      %p27 = scmp.ge.s32.totalorder %s26, 1
      %s28 = scalar_select %p27, 0, %s26
      %s29 = sadd.s32 1, %s20
      %s30 = scalar_select %p27, %s29, %s20
      %p31 = scmp.ge.s32.totalorder %s30, 2
      %s32 = scalar_select %p31, 0, %s30
      %s33 = ssub.s32 %s21, %s28
      %p34 = scmp.eq.s32.totalorder %s33, 0
      %s36 = sadd.s32 %s35, 1
      %s37 = scalar_select %p34, %s35, %s36
      %p40 = pneg %p34
      %p41 = scmp.eq.s32.totalorder %s13, 1
      %p42 = por %p40, %p41
      %p43 = scmp.ne.s32.totalorder %s35, %s38
      %p44 = scmp.eq.s32.totalorder %s13, 0
      %p45 = por %p43, %p44
      %p46 = scmp.ne.s32.totalorder %s35, %s38
      %p47 = scmp.eq.s32.totalorder %s18, 1
      %p48 = por %p46, %p47
      %p49 = scmp.ne.s32.totalorder %s38, %s39
      %p50 = scmp.eq.s32.totalorder %s18, 0
      %p51 = por %p49, %p50
      %p52 = scmp.ne.s32.totalorder %s38, %s39
      %p53 = scmp.eq.s32.totalorder %s19, 1
      %p54 = por %p52, %p53
      %p56 = scmp.ne.s32.totalorder %s39, %s55
      %p57 = scmp.eq.s32.totalorder %s19, 0
      %p58 = por %p56, %p57
      %s59 = ssub.s32 %s21, %s28
      %p60 = scmp.eq.s32.totalorder %s59, 0
      %s62 = sadd.s32 %s61, 1
      %s63 = scalar_select %p60, %s61, %s62
      %p66 = pneg %p60
      %p67 = scmp.eq.s32.totalorder %s13, 1
      %p68 = por %p66, %p67
      %p69 = scmp.ne.s32.totalorder %s61, %s64
      %p70 = scmp.eq.s32.totalorder %s13, 0
      %p71 = por %p69, %p70
      %p72 = scmp.ne.s32.totalorder %s61, %s64
      %p73 = scmp.eq.s32.totalorder %s18, 1
      %p74 = por %p72, %p73
      %p75 = scmp.ne.s32.totalorder %s64, %s65
      %p76 = scmp.eq.s32.totalorder %s18, 0
      %p77 = por %p75, %p76
      %p78 = scmp.ne.s32.totalorder %s64, %s65
      %p79 = scmp.eq.s32.totalorder %s19, 1
      %p80 = por %p78, %p79
      %p82 = scmp.ne.s32.totalorder %s65, %s81
      %p83 = scmp.eq.s32.totalorder %s19, 0
      %p84 = por %p82, %p83
      %s86 = sadd.s32 %s85, 1
      %p89 = scmp.eq.s32.totalorder %s13, 1
      %p90 = scmp.ne.s32.totalorder %s85, %s87
      %p91 = scmp.eq.s32.totalorder %s13, 0
      %p92 = por %p90, %p91
      %p93 = scmp.ne.s32.totalorder %s85, %s87
      %p94 = scmp.eq.s32.totalorder %s18, 1
      %p95 = por %p93, %p94
      %p96 = scmp.ne.s32.totalorder %s87, %s88
      %p97 = scmp.eq.s32.totalorder %s18, 0
      %p98 = por %p96, %p97
      %p99 = scmp.ne.s32.totalorder %s87, %s88
      %p100 = scmp.eq.s32.totalorder %s19, 1
      %p101 = por %p99, %p100
      %p103 = scmp.ne.s32.totalorder %s88, %s102
      %p104 = scmp.eq.s32.totalorder %s19, 0
      %p105 = por %p103, %p104
      %s106 = ssub.s32 %s20, %s32
      %p107 = scmp.eq.s32.totalorder %s106, 0
      %s109 = sadd.s32 %s108, 1
      %s110 = scalar_select %p107, %s108, %s109
      %p113 = pneg %p107
      %p114 = scmp.eq.s32.totalorder %s13, 1
      %p115 = por %p113, %p114
      %p116 = scmp.ne.s32.totalorder %s108, %s111
      %p117 = scmp.eq.s32.totalorder %s13, 0
      %p118 = por %p116, %p117
      %p119 = scmp.ne.s32.totalorder %s108, %s111
      %p120 = scmp.eq.s32.totalorder %s18, 1
      %p121 = por %p119, %p120
      %p122 = scmp.ne.s32.totalorder %s111, %s112
      %p123 = scmp.eq.s32.totalorder %s18, 0
      %p124 = por %p122, %p123
      %p125 = scmp.ne.s32.totalorder %s111, %s112
      %p126 = scmp.eq.s32.totalorder %s19, 1
      %p127 = por %p125, %p126
      %p129 = scmp.ne.s32.totalorder %s112, %s128
      %p130 = scmp.eq.s32.totalorder %s19, 0
      %p131 = por %p129, %p130
      %s132 = ssub.s32 %s20, %s32
      %s133 = ssub.s32 %s21, %s28
      %s134 = sor.u32 %s132, %s133
      %p135 = scmp.eq.s32.totalorder %s134, 0
      %s137 = sadd.s32 %s136, 1
      %s138 = scalar_select %p135, %s136, %s137
      %p141 = pneg %p135
      %p142 = scmp.eq.s32.totalorder %s13, 1
      %p143 = por %p141, %p142
      %p144 = scmp.ne.s32.totalorder %s136, %s139
      %p145 = scmp.eq.s32.totalorder %s13, 0
      %p146 = por %p144, %p145
      %p147 = scmp.ne.s32.totalorder %s136, %s139
      %p148 = scmp.eq.s32.totalorder %s18, 1
      %p149 = por %p147, %p148
      %p150 = scmp.ne.s32.totalorder %s139, %s140
      %p151 = scmp.eq.s32.totalorder %s18, 0
      %p152 = por %p150, %p151
      %p153 = scmp.ne.s32.totalorder %s139, %s140
      %p154 = scmp.eq.s32.totalorder %s19, 1
      %p155 = por %p153, %p154
      %p157 = scmp.ne.s32.totalorder %s140, %s156
      %p158 = scmp.eq.s32.totalorder %s19, 0
      %p159 = por %p157, %p158
      %p160 = scmp.le.s32.totalorder 1, %s13
      %p161 = scmp.lt.s32.totalorder %s13, 3
      %p162 = pnand %p160, %p161
      %p163 = pneg %p162
      // Predicated region
      $region9: #{tpu_custom_call.1} parent=5 // pred_check
        _
      $region10: #{tpu_custom_call.1} parent=5 // pred_check_branch
        %165 = sbr.rel (%p162) target = $region12
      $region11: #{tpu_custom_call.1} parent=5 // pred_region
        %s166 = ssub.s32 %s13, 1
        // Predicated region
        $region13: #{tpu_custom_call.1} parent=11 // pred_check
          %p167 = pneg %p51
        $region14: #{tpu_custom_call.1} parent=11 // pred_check_branch
          %169 = sbr.rel (%p167) target = $region16
        $region15: #{tpu_custom_call.1} parent=11 // pred_region
          %p170 = scmp.lt.s32.totalorder %s23, 0
          %s171 = scalar_select %p170, %s23, 0
          %s172 = smul.addr %s171, 8
          %s173 = scalar_lea.vmem %s0, %s172
        $region16: #{tpu_custom_call.1} parent=11 // pred_fallthru
          _
        // Predicated region
        $region17: #{tpu_custom_call.1} parent=11 // pred_check
          %p174 = pneg %p77
        $region18: #{tpu_custom_call.1} parent=11 // pred_check_branch
          %176 = sbr.rel (%p174) target = $region20
        $region19: #{tpu_custom_call.1} parent=11 // pred_region
          %p177 = scmp.lt.s32.totalorder %s23, 0
          %s178 = scalar_select %p177, %s23, 0
          %s179 = smul.addr %s178, 8
          %s180 = scalar_lea.vmem %s1, %s179
        $region20: #{tpu_custom_call.1} parent=11 // pred_fallthru
          _
        // Predicated region
        $region21: #{tpu_custom_call.1} parent=11 // pred_check
          %p181 = pneg %p98
        $region22: #{tpu_custom_call.1} parent=11 // pred_check_branch
          %183 = sbr.rel (%p181) target = $region24
        $region23: #{tpu_custom_call.1} parent=11 // pred_region
          _
        $region24: #{tpu_custom_call.1} parent=11 // pred_fallthru
          _
      $region12: #{tpu_custom_call.1} parent=5 // pred_fallthru
        _
      %p184 = scmp.lt.s32.totalorder %s13, 2
      // Predicated region
      $region25: #{tpu_custom_call.1} parent=5 // pred_check
        %p185 = pneg %p184
      $region26: #{tpu_custom_call.1} parent=5 // pred_check_branch
        %187 = sbr.rel (%p185) target = $region28
      $region27: #{tpu_custom_call.1} parent=5 // pred_region
        // Predicated region
        $region29: #{tpu_custom_call.1} parent=27 // pred_check
          %p188 = pneg %p118
        $region30: #{tpu_custom_call.1} parent=27 // pred_check_branch
          %190 = sbr.rel (%p188) target = $region32
        $region31: #{tpu_custom_call.1} parent=27 // pred_region
          %p191 = scmp.lt.s32.totalorder %s20, 1
          %s192 = scalar_select %p191, %s20, 1
          %s193 = smul.addr %s192, 2
          %s194 = smul.addr %s193, 4
          %s195 = scalar_lea.vmem %s3, %s194
        $region32: #{tpu_custom_call.1} parent=27 // pred_fallthru
          _
      $region28: #{tpu_custom_call.1} parent=5 // pred_fallthru
        _
      %p196 = scmp.le.s32.totalorder 1, %s13
      %p197 = scmp.lt.s32.totalorder %s13, 3
      %p198 = pnand %p196, %p197
      %p199 = pneg %p198
      // Predicated region
      $region33: #{tpu_custom_call.1} parent=5 // pred_check
        _
      $region34: #{tpu_custom_call.1} parent=5 // pred_check_branch
        %201 = sbr.rel (%p198) target = $region36
      $region35: #{tpu_custom_call.1} parent=5 // pred_region
        %s202 = ssub.s32 %s13, 1
        %p203 = scmp.lt.s32.totalorder %s23, 0
        %s204 = scalar_select %p203, %s23, 0
        %s205 = smul.addr %s204, 8
        %s206 = scalar_lea.vmem %s0, %s205
        %p207 = pneg %p51
        %p208 = pneg %p48
        %p209 = scmp.lt.s32.totalorder %s23, 0
        %s210 = scalar_select %p209, %s23, 0
        %s211 = smul.addr %s210, 8
        %s212 = scalar_lea.vmem %s1, %s211
        %p213 = pneg %p77
        %p214 = pneg %p74
        %p215 = pneg %p98
        %p216 = pneg %p95
        %p217 = scmp.lt.s32.totalorder %s22, 1
        %s218 = scalar_select %p217, %s22, 1
        %s219 = smul.addr %s218, 2
        %s220 = smul.addr %s219, 4
        %s221 = scalar_lea.vmem %s3, %s220
        %p222 = pneg %p124
        %p223 = pneg %p121
        %p224 = pneg %p152
        %p225 = pneg %p149
        %s226 = sand.u32 %s139, 1
        %s227 = scalar_lea.sflag [#allocation3], %s226
        %s228 = sand.u32 %s139, 1
        %s229 = smul.addr %s228, 16
        %s230 = scalar_lea.vmem [#allocation2], %s229
        %p231 = scmp.lt.s32.totalorder %s23, 0
        %s232 = scalar_select %p231, %s23, 0
        %s233 = smul.addr %s232, 8
        %s234 = scalar_lea.vmem %s0, %s233
        %p235 = scmp.lt.s32.totalorder %s23, 0
        %s236 = scalar_select %p235, %s23, 0
        %s237 = smul.addr %s236, 8
        %s238 = scalar_lea.vmem %s1, %s237
        %p239 = scmp.lt.s32.totalorder %s22, 1
        %s240 = scalar_select %p239, %s22, 1
        %s241 = smul.addr %s240, 2
        %s242 = smul.addr %s241, 4
        %s243 = scalar_lea.vmem %s3, %s242
        %v244 = vld [vmem:[%s243] sm:$0xff]
        %v246 = vcombine.high %v244, %v244
        %248 = vrot.lane.b32.xlu0 %v244, 17
        %v249 = vpop.permute.xlu0 %248
        %250 = vrot.lane.b32.xlu0 %v246, 17
        %v251 = vpop.permute.xlu0 %250
        %v252 = vlaneseq
        %v253 = vand.u32 %v252, 127
        %vm254 = vcmp.lt.s32.totalorder %v253, 17
        %v255 = vsel %vm254, %v249, %v251
        %v256 = vsel %vm254, %v251, %v249
        %v257 = vld [vmem:[%s2] sm:$0x3]
        %v259 = vlaneseq
        %v260 = vshrl.u32 %v259, 7
        %v261 = vsub.s32 0, %v260
        %v262 = vrot.slane %v257, %v261
        %v263 = vlaneseq
        %v264 = vshrl.u32 %v263, 7
        %v265 = vsub.s32 1, %v264
        %v266 = vrot.slane %v257, %v265
        %v269 = vmul.f32 %v256, %v262
        %v270 = vmul.f32 %v255, %v266
        %v271 = vld [vmem:[%s234] sm:$0xff]
        %272 = vrot.lane.b32.xlu0 %v244, 16
        %v273 = vpop.permute.xlu0 %272
        %274 = vrot.lane.b32.xlu0 %v246, 16
        %v275 = vpop.permute.xlu0 %274
        %vm276 = vcmp.lt.s32.totalorder %v253, 16
        %v277 = vsel %vm276, %v273, %v275
        %v278 = vsel %vm276, %v275, %v273
        %s279 = scalar_lea.vmem %s2, 2
        %v280 = vld [vmem:[%s279] sm:$0x3]
        %v282 = vlaneseq
        %v283 = vshrl.u32 %v282, 7
        %v284 = vsub.s32 0, %v283
        %v285 = vrot.slane %v280, %v284
        %v286 = vlaneseq
        %v287 = vshrl.u32 %v286, 7
        %v288 = vsub.s32 1, %v287
        %v289 = vrot.slane %v280, %v288
        %v292 = vmul.f32 %v278, %v285
        %v293 = vmul.f32 %v277, %v289
        %s294 = scalar_lea.vmem %s234, 8
        %v295 = vld [vmem:[%s294] sm:$0xff]
        %vm296 = vcmask 31744
        %v298 = vsel %vm296, %v295, 0
        %vm300 = vcmask 1043456
        %v302 = vsel %vm300, %v292, 0
        %v305 = vsel %vm300, %v293, 0
        %307 = vmatprep.subr.mxu0 %v305
        %308 = vmatpush1.msra.mxu0 %v302
        %309 = vmatprep.subr.mxu0 0.0
        %310 = vmatpush1.msra.mxu0 0.0
        %311 = vmatprep.subr.mxu0 0.0
        %312 = vmatpush1.msra.mxu0 0.0
        %313 = vmatprep.subr.mxu0 0.0
        %314 = vmatpush1.msra.mxu0 0.0
        %315 = vmatprep.subr.mxu0 0.0
        %316 = vmatpush1.msra.mxu0 0.0
        %317 = vmatprep.subr.mxu0 0.0
        %318 = vmatpush1.msra.mxu0 0.0
        %319 = vmatprep.subr.mxu0 0.0
        %320 = vmatpush1.msra.mxu0 0.0
        %321 = vmatprep.subr.mxu0 0.0
        %322 = vmatpush1.msra.mxu0 0.0
        %323 = vmatprep.subr.mxu0 0.0
        %324 = vmatpush1.msra.mxu0 0.0
        %325 = vmatprep.subr.mxu0 0.0
        %326 = vmatpush1.msra.mxu0 0.0
        %327 = vmatprep.subr.mxu0 0.0
        %328 = vmatpush1.msra.mxu0 0.0
        %329 = vmatprep.subr.mxu0 0.0
        %330 = vmatpush1.msra.mxu0 0.0
        %331 = vmatprep.subr.mxu0 0.0
        %332 = vmatpush1.msra.mxu0 0.0
        %333 = vmatprep.subr.mxu0 0.0
        %334 = vmatpush1.msra.mxu0 0.0
        %335 = vmatprep.subr.mxu0 0.0
        %336 = vmatpush1.msra.mxu0 0.0
        %337 = vmatprep.subr.mxu0 0.0
        %338 = vmatpush1.msra.mxu0 0.0
        %339 = vmatprep.subr.mxu0 0.0
        %340 = vmatpush1.msra.mxu0 0.0
        %341 = vmatprep.subr.mxu0 0.0
        %342 = vmatpush1.msra.mxu0 0.0
        %343 = vmatprep.subr.mxu0 0.0
        %344 = vmatpush1.msra.mxu0 0.0
        %345 = vmatprep.subr.mxu0 0.0
        %346 = vmatpush1.msra.mxu0 0.0
        %347 = vmatprep.subr.mxu0 0.0
        %348 = vmatpush1.msra.mxu0 0.0
        %349 = vmatprep.subr.mxu0 0.0
        %350 = vmatpush1.msra.mxu0 0.0
        %351 = vmatprep.subr.mxu0 0.0
        %352 = vmatpush1.msra.mxu0 0.0
        %353 = vmatprep.subr.mxu0 0.0
        %354 = vmatpush1.msra.mxu0 0.0
        %355 = vmatprep.subr.mxu0 0.0
        %356 = vmatpush1.msra.mxu0 0.0
        %357 = vmatprep.subr.mxu0 0.0
        %358 = vmatpush1.msra.mxu0 0.0
        %359 = vmatprep.subr.mxu0 0.0
        %360 = vmatpush1.msra.mxu0 0.0
        %361 = vmatprep.subr.mxu0 0.0
        %362 = vmatpush1.msra.mxu0 0.0
        %363 = vmatprep.subr.mxu0 0.0
        %364 = vmatpush1.msra.mxu0 0.0
        %365 = vmatprep.subr.mxu0 0.0
        %366 = vmatpush1.msra.mxu0 0.0
        %367 = vmatprep.subr.mxu0 0.0
        %368 = vmatpush1.msra.mxu0 0.0
        %369 = vmatprep.subr.mxu0 0.0
        %370 = vmatpush1.msra.mxu0 0.0
        %371 = vmatprep.mubr.f32.mxu0 0.0
        %372 = vmatmul.mubr.f32.gmra.mrb[0].mxu0 %v298
        %v373 = vpop.f32.mrb[0].mxu0
        %v374 = vadd.f32 0.0, %v373
        %v375 = vpop.f32.mrb[0].mxu0
        %v376 = vadd.f32 0.0, %v375
        %377 = vdwg.mxu0
        %v379 = vsel %vm296, %v271, 0
        %v382 = vsel %vm300, %v269, 0
        %v385 = vsel %vm300, %v270, 0
        %387 = vmatprep.subr.mxu0 %v385
        %388 = vmatpush1.msra.mxu0 %v382
        %389 = vmatprep.subr.mxu0 0.0
        %390 = vmatpush1.msra.mxu0 0.0
        %391 = vmatprep.subr.mxu0 0.0
        %392 = vmatpush1.msra.mxu0 0.0
        %393 = vmatprep.subr.mxu0 0.0
        %394 = vmatpush1.msra.mxu0 0.0
        %395 = vmatprep.subr.mxu0 0.0
        %396 = vmatpush1.msra.mxu0 0.0
        %397 = vmatprep.subr.mxu0 0.0
        %398 = vmatpush1.msra.mxu0 0.0
        %399 = vmatprep.subr.mxu0 0.0
        %400 = vmatpush1.msra.mxu0 0.0
        %401 = vmatprep.subr.mxu0 0.0
        %402 = vmatpush1.msra.mxu0 0.0
        %403 = vmatprep.subr.mxu0 0.0
        %404 = vmatpush1.msra.mxu0 0.0
        %405 = vmatprep.subr.mxu0 0.0
        %406 = vmatpush1.msra.mxu0 0.0
        %407 = vmatprep.subr.mxu0 0.0
        %408 = vmatpush1.msra.mxu0 0.0
        %409 = vmatprep.subr.mxu0 0.0
        %410 = vmatpush1.msra.mxu0 0.0
        %411 = vmatprep.subr.mxu0 0.0
        %412 = vmatpush1.msra.mxu0 0.0
        %413 = vmatprep.subr.mxu0 0.0
        %414 = vmatpush1.msra.mxu0 0.0
        %415 = vmatprep.subr.mxu0 0.0
        %416 = vmatpush1.msra.mxu0 0.0
        %417 = vmatprep.subr.mxu0 0.0
        %418 = vmatpush1.msra.mxu0 0.0
        %419 = vmatprep.subr.mxu0 0.0
        %420 = vmatpush1.msra.mxu0 0.0
        %421 = vmatprep.subr.mxu0 0.0
        %422 = vmatpush1.msra.mxu0 0.0
        %423 = vmatprep.subr.mxu0 0.0
        %424 = vmatpush1.msra.mxu0 0.0
        %425 = vmatprep.subr.mxu0 0.0
        %426 = vmatpush1.msra.mxu0 0.0
        %427 = vmatprep.subr.mxu0 0.0
        %428 = vmatpush1.msra.mxu0 0.0
        %429 = vmatprep.subr.mxu0 0.0
        %430 = vmatpush1.msra.mxu0 0.0
        %431 = vmatprep.subr.mxu0 0.0
        %432 = vmatpush1.msra.mxu0 0.0
        %433 = vmatprep.subr.mxu0 0.0
        %434 = vmatpush1.msra.mxu0 0.0
        %435 = vmatprep.subr.mxu0 0.0
        %436 = vmatpush1.msra.mxu0 0.0
        %437 = vmatprep.subr.mxu0 0.0
        %438 = vmatpush1.msra.mxu0 0.0
        %439 = vmatprep.subr.mxu0 0.0
        %440 = vmatpush1.msra.mxu0 0.0
        %441 = vmatprep.subr.mxu0 0.0
        %442 = vmatpush1.msra.mxu0 0.0
        %443 = vmatprep.subr.mxu0 0.0
        %444 = vmatpush1.msra.mxu0 0.0
        %445 = vmatprep.subr.mxu0 0.0
        %446 = vmatpush1.msra.mxu0 0.0
        %447 = vmatprep.subr.mxu0 0.0
        %448 = vmatpush1.msra.mxu0 0.0
        %449 = vmatprep.subr.mxu0 0.0
        %450 = vmatpush1.msra.mxu0 0.0
        %451 = vmatprep.mubr.f32.mxu0 0.0
        %452 = vmatmul.mubr.f32.gmra.mrb[0].mxu0 %v379
        %v453 = vpop.f32.mrb[0].mxu0
        %v454 = vadd.f32 %v374, %v453
        %v455 = vpop.f32.mrb[0].mxu0
        %v456 = vadd.f32 %v376, %v455
        %457 = vdwg.mxu0
        %458 = vrot.lane.b32.xlu0 %v244, 15
        %v459 = vpop.permute.xlu0 %458
        %460 = vrot.lane.b32.xlu0 %v246, 15
        %v461 = vpop.permute.xlu0 %460
        %vm462 = vcmp.lt.s32.totalorder %v253, 15
        %v463 = vsel %vm462, %v459, %v461
        %v464 = vsel %vm462, %v461, %v459
        %s465 = scalar_lea.vmem %s2, 4
        %v466 = vld [vmem:[%s465] sm:$0x3]
        %v468 = vlaneseq
        %v469 = vshrl.u32 %v468, 7
        %v470 = vsub.s32 0, %v469
        %v471 = vrot.slane %v466, %v470
        %v472 = vlaneseq
        %v473 = vshrl.u32 %v472, 7
        %v474 = vsub.s32 1, %v473
        %v475 = vrot.slane %v466, %v474
        %v478 = vmul.f32 %v464, %v471
        %v479 = vmul.f32 %v463, %v475
        %s480 = scalar_lea.vmem %s234, 16
        %v481 = vld [vmem:[%s480] sm:$0xff]
        %v483 = vsel %vm296, %v481, 0
        %v486 = vsel %vm300, %v478, 0
        %v489 = vsel %vm300, %v479, 0
        %491 = vmatprep.subr.mxu0 %v489
        %492 = vmatpush1.msra.mxu0 %v486
        %493 = vmatprep.subr.mxu0 0.0
        %494 = vmatpush1.msra.mxu0 0.0
        %495 = vmatprep.subr.mxu0 0.0
        %496 = vmatpush1.msra.mxu0 0.0
        %497 = vmatprep.subr.mxu0 0.0
        %498 = vmatpush1.msra.mxu0 0.0
        %499 = vmatprep.subr.mxu0 0.0
        %500 = vmatpush1.msra.mxu0 0.0
        %501 = vmatprep.subr.mxu0 0.0
        %502 = vmatpush1.msra.mxu0 0.0
        %503 = vmatprep.subr.mxu0 0.0
        %504 = vmatpush1.msra.mxu0 0.0
        %505 = vmatprep.subr.mxu0 0.0
        %506 = vmatpush1.msra.mxu0 0.0
        %507 = vmatprep.subr.mxu0 0.0
        %508 = vmatpush1.msra.mxu0 0.0
        %509 = vmatprep.subr.mxu0 0.0
        %510 = vmatpush1.msra.mxu0 0.0
        %511 = vmatprep.subr.mxu0 0.0
        %512 = vmatpush1.msra.mxu0 0.0
        %513 = vmatprep.subr.mxu0 0.0
        %514 = vmatpush1.msra.mxu0 0.0
        %515 = vmatprep.subr.mxu0 0.0
        %516 = vmatpush1.msra.mxu0 0.0
        %517 = vmatprep.subr.mxu0 0.0
        %518 = vmatpush1.msra.mxu0 0.0
        %519 = vmatprep.subr.mxu0 0.0
        %520 = vmatpush1.msra.mxu0 0.0
        %521 = vmatprep.subr.mxu0 0.0
        %522 = vmatpush1.msra.mxu0 0.0
        %523 = vmatprep.subr.mxu0 0.0
        %524 = vmatpush1.msra.mxu0 0.0
        %525 = vmatprep.subr.mxu0 0.0
        %526 = vmatpush1.msra.mxu0 0.0
        %527 = vmatprep.subr.mxu0 0.0
        %528 = vmatpush1.msra.mxu0 0.0
        %529 = vmatprep.subr.mxu0 0.0
        %530 = vmatpush1.msra.mxu0 0.0
        %531 = vmatprep.subr.mxu0 0.0
        %532 = vmatpush1.msra.mxu0 0.0
        %533 = vmatprep.subr.mxu0 0.0
        %534 = vmatpush1.msra.mxu0 0.0
        %535 = vmatprep.subr.mxu0 0.0
        %536 = vmatpush1.msra.mxu0 0.0
        %537 = vmatprep.subr.mxu0 0.0
        %538 = vmatpush1.msra.mxu0 0.0
        %539 = vmatprep.subr.mxu0 0.0
        %540 = vmatpush1.msra.mxu0 0.0
        %541 = vmatprep.subr.mxu0 0.0
        %542 = vmatpush1.msra.mxu0 0.0
        %543 = vmatprep.subr.mxu0 0.0
        %544 = vmatpush1.msra.mxu0 0.0
        %545 = vmatprep.subr.mxu0 0.0
        %546 = vmatpush1.msra.mxu0 0.0
        %547 = vmatprep.subr.mxu0 0.0
        %548 = vmatpush1.msra.mxu0 0.0
        %549 = vmatprep.subr.mxu0 0.0
        %550 = vmatpush1.msra.mxu0 0.0
        %551 = vmatprep.subr.mxu0 0.0
        %552 = vmatpush1.msra.mxu0 0.0
        %553 = vmatprep.subr.mxu0 0.0
        %554 = vmatpush1.msra.mxu0 0.0
        %555 = vmatprep.mubr.f32.mxu0 0.0
        %556 = vmatmul.mubr.f32.gmra.mrb[0].mxu0 %v483
        %v557 = vpop.f32.mrb[0].mxu0
        %v558 = vadd.f32 0.0, %v557
        %v559 = vpop.f32.mrb[0].mxu0
        %v560 = vadd.f32 0.0, %v559
        %561 = vdwg.mxu0
        %v562 = vadd.f32 %v454, %v558
        %v563 = vadd.f32 %v456, %v560
        %564 = vrot.lane.b32.xlu0 %v244, 1
        %v565 = vpop.permute.xlu0 %564
        %566 = vrot.lane.b32.xlu0 %v246, 1
        %v567 = vpop.permute.xlu0 %566
        %vm568 = vcmp.lt.s32.totalorder %v253, 1
        %v569 = vsel %vm568, %v565, %v567
        %v570 = vsel %vm568, %v567, %v565
        %s571 = scalar_lea.vmem %s2, 6
        %v572 = vld [vmem:[%s571] sm:$0x3]
        %v574 = vlaneseq
        %v575 = vshrl.u32 %v574, 7
        %v576 = vsub.s32 0, %v575
        %v577 = vrot.slane %v572, %v576
        %v578 = vlaneseq
        %v579 = vshrl.u32 %v578, 7
        %v580 = vsub.s32 1, %v579
        %v581 = vrot.slane %v572, %v580
        %v584 = vmul.f32 %v570, %v577
        %v585 = vmul.f32 %v569, %v581
        %s586 = scalar_lea.vmem %s234, 24
        %v587 = vld [vmem:[%s586] sm:$0xff]
        %v589 = vsel %vm296, %v587, 0
        %v592 = vsel %vm300, %v584, 0
        %v595 = vsel %vm300, %v585, 0
        %597 = vmatprep.subr.mxu0 %v595
        %598 = vmatpush1.msra.mxu0 %v592
        %599 = vmatprep.subr.mxu0 0.0
        %600 = vmatpush1.msra.mxu0 0.0
        %601 = vmatprep.subr.mxu0 0.0
        %602 = vmatpush1.msra.mxu0 0.0
        %603 = vmatprep.subr.mxu0 0.0
        %604 = vmatpush1.msra.mxu0 0.0
        %605 = vmatprep.subr.mxu0 0.0
        %606 = vmatpush1.msra.mxu0 0.0
        %607 = vmatprep.subr.mxu0 0.0
        %608 = vmatpush1.msra.mxu0 0.0
        %609 = vmatprep.subr.mxu0 0.0
        %610 = vmatpush1.msra.mxu0 0.0
        %611 = vmatprep.subr.mxu0 0.0
        %612 = vmatpush1.msra.mxu0 0.0
        %613 = vmatprep.subr.mxu0 0.0
        %614 = vmatpush1.msra.mxu0 0.0
        %615 = vmatprep.subr.mxu0 0.0
        %616 = vmatpush1.msra.mxu0 0.0
        %617 = vmatprep.subr.mxu0 0.0
        %618 = vmatpush1.msra.mxu0 0.0
        %619 = vmatprep.subr.mxu0 0.0
        %620 = vmatpush1.msra.mxu0 0.0
        %621 = vmatprep.subr.mxu0 0.0
        %622 = vmatpush1.msra.mxu0 0.0
        %623 = vmatprep.subr.mxu0 0.0
        %624 = vmatpush1.msra.mxu0 0.0
        %625 = vmatprep.subr.mxu0 0.0
        %626 = vmatpush1.msra.mxu0 0.0
        %627 = vmatprep.subr.mxu0 0.0
        %628 = vmatpush1.msra.mxu0 0.0
        %629 = vmatprep.subr.mxu0 0.0
        %630 = vmatpush1.msra.mxu0 0.0
        %631 = vmatprep.subr.mxu0 0.0
        %632 = vmatpush1.msra.mxu0 0.0
        %633 = vmatprep.subr.mxu0 0.0
        %634 = vmatpush1.msra.mxu0 0.0
        %635 = vmatprep.subr.mxu0 0.0
        %636 = vmatpush1.msra.mxu0 0.0
        %637 = vmatprep.subr.mxu0 0.0
        %638 = vmatpush1.msra.mxu0 0.0
        %639 = vmatprep.subr.mxu0 0.0
        %640 = vmatpush1.msra.mxu0 0.0
        %641 = vmatprep.subr.mxu0 0.0
        %642 = vmatpush1.msra.mxu0 0.0
        %643 = vmatprep.subr.mxu0 0.0
        %644 = vmatpush1.msra.mxu0 0.0
        %645 = vmatprep.subr.mxu0 0.0
        %646 = vmatpush1.msra.mxu0 0.0
        %647 = vmatprep.subr.mxu0 0.0
        %648 = vmatpush1.msra.mxu0 0.0
        %649 = vmatprep.subr.mxu0 0.0
        %650 = vmatpush1.msra.mxu0 0.0
        %651 = vmatprep.subr.mxu0 0.0
        %652 = vmatpush1.msra.mxu0 0.0
        %653 = vmatprep.subr.mxu0 0.0
        %654 = vmatpush1.msra.mxu0 0.0
        %655 = vmatprep.subr.mxu0 0.0
        %656 = vmatpush1.msra.mxu0 0.0
        %657 = vmatprep.subr.mxu0 0.0
        %658 = vmatpush1.msra.mxu0 0.0
        %659 = vmatprep.subr.mxu0 0.0
        %660 = vmatpush1.msra.mxu0 0.0
        %661 = vmatprep.mubr.f32.mxu0 0.0
        %662 = vmatmul.mubr.f32.gmra.mrb[0].mxu0 %v589
        %v663 = vpop.f32.mrb[0].mxu0
        %v664 = vadd.f32 0.0, %v663
        %v665 = vpop.f32.mrb[0].mxu0
        %v666 = vadd.f32 0.0, %v665
        %667 = vdwg.mxu0
        %v668 = vadd.f32 %v562, %v664
        %v669 = vadd.f32 %v563, %v666
        %s670 = scalar_lea.vmem %s234, 32
        %v671 = vld [vmem:[%s670] sm:$0xff]
        %v673 = vsel %vm296, %v671, 0
        %v675 = vsel %vm300, %v244, 0
        %v677 = vsel %vm300, %v246, 0
        %679 = vmatprep.subr.mxu0 %v677
        %680 = vmatpush1.msra.mxu0 %v675
        %681 = vmatprep.subr.mxu0 0.0
        %682 = vmatpush1.msra.mxu0 0.0
        %683 = vmatprep.subr.mxu0 0.0
        %684 = vmatpush1.msra.mxu0 0.0
        %685 = vmatprep.subr.mxu0 0.0
        %686 = vmatpush1.msra.mxu0 0.0
        %687 = vmatprep.subr.mxu0 0.0
        %688 = vmatpush1.msra.mxu0 0.0
        %689 = vmatprep.subr.mxu0 0.0
        %690 = vmatpush1.msra.mxu0 0.0
        %691 = vmatprep.subr.mxu0 0.0
        %692 = vmatpush1.msra.mxu0 0.0
        %693 = vmatprep.subr.mxu0 0.0
        %694 = vmatpush1.msra.mxu0 0.0
        %695 = vmatprep.subr.mxu0 0.0
        %696 = vmatpush1.msra.mxu0 0.0
        %697 = vmatprep.subr.mxu0 0.0
        %698 = vmatpush1.msra.mxu0 0.0
        %699 = vmatprep.subr.mxu0 0.0
        %700 = vmatpush1.msra.mxu0 0.0
        %701 = vmatprep.subr.mxu0 0.0
        %702 = vmatpush1.msra.mxu0 0.0
        %703 = vmatprep.subr.mxu0 0.0
        %704 = vmatpush1.msra.mxu0 0.0
        %705 = vmatprep.subr.mxu0 0.0
        %706 = vmatpush1.msra.mxu0 0.0
        %707 = vmatprep.subr.mxu0 0.0
        %708 = vmatpush1.msra.mxu0 0.0
        %709 = vmatprep.subr.mxu0 0.0
        %710 = vmatpush1.msra.mxu0 0.0
        %711 = vmatprep.subr.mxu0 0.0
        %712 = vmatpush1.msra.mxu0 0.0
        %713 = vmatprep.subr.mxu0 0.0
        %714 = vmatpush1.msra.mxu0 0.0
        %715 = vmatprep.subr.mxu0 0.0
        %716 = vmatpush1.msra.mxu0 0.0
        %717 = vmatprep.subr.mxu0 0.0
        %718 = vmatpush1.msra.mxu0 0.0
        %719 = vmatprep.subr.mxu0 0.0
        %720 = vmatpush1.msra.mxu0 0.0
        %721 = vmatprep.subr.mxu0 0.0
        %722 = vmatpush1.msra.mxu0 0.0
        %723 = vmatprep.subr.mxu0 0.0
        %724 = vmatpush1.msra.mxu0 0.0
        %725 = vmatprep.subr.mxu0 0.0
        %726 = vmatpush1.msra.mxu0 0.0
        %727 = vmatprep.subr.mxu0 0.0
        %728 = vmatpush1.msra.mxu0 0.0
        %729 = vmatprep.subr.mxu0 0.0
        %730 = vmatpush1.msra.mxu0 0.0
        %731 = vmatprep.subr.mxu0 0.0
        %732 = vmatpush1.msra.mxu0 0.0
        %733 = vmatprep.subr.mxu0 0.0
        %734 = vmatpush1.msra.mxu0 0.0
        %735 = vmatprep.subr.mxu0 0.0
        %736 = vmatpush1.msra.mxu0 0.0
        %737 = vmatprep.subr.mxu0 0.0
        %738 = vmatpush1.msra.mxu0 0.0
        %739 = vmatprep.subr.mxu0 0.0
        %740 = vmatpush1.msra.mxu0 0.0
        %741 = vmatprep.subr.mxu0 0.0
        %742 = vmatpush1.msra.mxu0 0.0
        %743 = vmatprep.mubr.f32.mxu0 0.0
        %744 = vmatmul.mubr.f32.gmra.mrb[0].mxu0 %v673
        %v745 = vpop.f32.mrb[0].mxu0
        %v746 = vadd.f32 0.0, %v745
        %v747 = vpop.f32.mrb[0].mxu0
        %v748 = vadd.f32 0.0, %v747
        %749 = vdwg.mxu0
        %v750 = vadd.f32 %v668, %v746
        %v751 = vadd.f32 %v669, %v748
        %752 = vrot.lane.b32.xlu0 %v244, 127
        %v753 = vpop.permute.xlu0 %752
        %754 = vrot.lane.b32.xlu0 %v246, 127
        %v755 = vpop.permute.xlu0 %754
        %vm756 = vcmp.lt.s32.totalorder %v253, 127
        %v757 = vsel %vm756, %v753, %v755
        %v758 = vsel %vm756, %v755, %v753
        %s759 = scalar_lea.vmem %s2, 10
        %v760 = vld [vmem:[%s759] sm:$0x3]
        %v762 = vlaneseq
        %v763 = vshrl.u32 %v762, 7
        %v764 = vsub.s32 0, %v763
        %v765 = vrot.slane %v760, %v764
        %v766 = vlaneseq
        %v767 = vshrl.u32 %v766, 7
        %v768 = vsub.s32 1, %v767
        %v769 = vrot.slane %v760, %v768
        %v772 = vmul.f32 %v757, %v765
        %v773 = vmul.f32 %v758, %v769
        %s774 = scalar_lea.vmem %s234, 40
        %v775 = vld [vmem:[%s774] sm:$0xff]
        %v777 = vsel %vm296, %v775, 0
        %v780 = vsel %vm300, %v772, 0
        %v783 = vsel %vm300, %v773, 0
        %785 = vmatprep.subr.mxu0 %v783
        %786 = vmatpush1.msra.mxu0 %v780
        %787 = vmatprep.subr.mxu0 0.0
        %788 = vmatpush1.msra.mxu0 0.0
        %789 = vmatprep.subr.mxu0 0.0
        %790 = vmatpush1.msra.mxu0 0.0
        %791 = vmatprep.subr.mxu0 0.0
        %792 = vmatpush1.msra.mxu0 0.0
        %793 = vmatprep.subr.mxu0 0.0
        %794 = vmatpush1.msra.mxu0 0.0
        %795 = vmatprep.subr.mxu0 0.0
        %796 = vmatpush1.msra.mxu0 0.0
        %797 = vmatprep.subr.mxu0 0.0
        %798 = vmatpush1.msra.mxu0 0.0
        %799 = vmatprep.subr.mxu0 0.0
        %800 = vmatpush1.msra.mxu0 0.0
        %801 = vmatprep.subr.mxu0 0.0
        %802 = vmatpush1.msra.mxu0 0.0
        %803 = vmatprep.subr.mxu0 0.0
        %804 = vmatpush1.msra.mxu0 0.0
        %805 = vmatprep.subr.mxu0 0.0
        %806 = vmatpush1.msra.mxu0 0.0
        %807 = vmatprep.subr.mxu0 0.0
        %808 = vmatpush1.msra.mxu0 0.0
        %809 = vmatprep.subr.mxu0 0.0
        %810 = vmatpush1.msra.mxu0 0.0
        %811 = vmatprep.subr.mxu0 0.0
        %812 = vmatpush1.msra.mxu0 0.0
        %813 = vmatprep.subr.mxu0 0.0
        %814 = vmatpush1.msra.mxu0 0.0
        %815 = vmatprep.subr.mxu0 0.0
        %816 = vmatpush1.msra.mxu0 0.0
        %817 = vmatprep.subr.mxu0 0.0
        %818 = vmatpush1.msra.mxu0 0.0
        %819 = vmatprep.subr.mxu0 0.0
        %820 = vmatpush1.msra.mxu0 0.0
        %821 = vmatprep.subr.mxu0 0.0
        %822 = vmatpush1.msra.mxu0 0.0
        %823 = vmatprep.subr.mxu0 0.0
        %824 = vmatpush1.msra.mxu0 0.0
        %825 = vmatprep.subr.mxu0 0.0
        %826 = vmatpush1.msra.mxu0 0.0
        %827 = vmatprep.subr.mxu0 0.0
        %828 = vmatpush1.msra.mxu0 0.0
        %829 = vmatprep.subr.mxu0 0.0
        %830 = vmatpush1.msra.mxu0 0.0
        %831 = vmatprep.subr.mxu0 0.0
        %832 = vmatpush1.msra.mxu0 0.0
        %833 = vmatprep.subr.mxu0 0.0
        %834 = vmatpush1.msra.mxu0 0.0
        %835 = vmatprep.subr.mxu0 0.0
        %836 = vmatpush1.msra.mxu0 0.0
        %837 = vmatprep.subr.mxu0 0.0
        %838 = vmatpush1.msra.mxu0 0.0
        %839 = vmatprep.subr.mxu0 0.0
        %840 = vmatpush1.msra.mxu0 0.0
        %841 = vmatprep.subr.mxu0 0.0
        %842 = vmatpush1.msra.mxu0 0.0
        %843 = vmatprep.subr.mxu0 0.0
        %844 = vmatpush1.msra.mxu0 0.0
        %845 = vmatprep.subr.mxu0 0.0
        %846 = vmatpush1.msra.mxu0 0.0
        %847 = vmatprep.subr.mxu0 0.0
        %848 = vmatpush1.msra.mxu0 0.0
        %849 = vmatprep.mubr.f32.mxu0 0.0
        %850 = vmatmul.mubr.f32.gmra.mrb[0].mxu0 %v777
        %v851 = vpop.f32.mrb[0].mxu0
        %v852 = vadd.f32 0.0, %v851
        %v853 = vpop.f32.mrb[0].mxu0
        %v854 = vadd.f32 0.0, %v853
        %855 = vdwg.mxu0
        %v856 = vadd.f32 %v750, %v852
        %v857 = vadd.f32 %v751, %v854
        %858 = vrot.lane.b32.xlu0 %v244, 113
        %v859 = vpop.permute.xlu0 %858
        %860 = vrot.lane.b32.xlu0 %v246, 113
        %v861 = vpop.permute.xlu0 %860
        %vm862 = vcmp.lt.s32.totalorder %v253, 113
        %v863 = vsel %vm862, %v859, %v861
        %v864 = vsel %vm862, %v861, %v859
        %s865 = scalar_lea.vmem %s2, 12
        %v866 = vld [vmem:[%s865] sm:$0x3]
        %v868 = vlaneseq
        %v869 = vshrl.u32 %v868, 7
        %v870 = vsub.s32 0, %v869
        %v871 = vrot.slane %v866, %v870
        %v872 = vlaneseq
        %v873 = vshrl.u32 %v872, 7
        %v874 = vsub.s32 1, %v873
        %v875 = vrot.slane %v866, %v874
        %v878 = vmul.f32 %v863, %v871
        %v879 = vmul.f32 %v864, %v875
        %s880 = scalar_lea.vmem %s234, 48
        %v881 = vld [vmem:[%s880] sm:$0xff]
        %v883 = vsel %vm296, %v881, 0
        %v886 = vsel %vm300, %v878, 0
        %v889 = vsel %vm300, %v879, 0
        %891 = vmatprep.subr.mxu0 %v889
        %892 = vmatpush1.msra.mxu0 %v886
        %893 = vmatprep.subr.mxu0 0.0
        %894 = vmatpush1.msra.mxu0 0.0
        %895 = vmatprep.subr.mxu0 0.0
        %896 = vmatpush1.msra.mxu0 0.0
        %897 = vmatprep.subr.mxu0 0.0
        %898 = vmatpush1.msra.mxu0 0.0
        %899 = vmatprep.subr.mxu0 0.0
        %900 = vmatpush1.msra.mxu0 0.0
        %901 = vmatprep.subr.mxu0 0.0
        %902 = vmatpush1.msra.mxu0 0.0
        %903 = vmatprep.subr.mxu0 0.0
        %904 = vmatpush1.msra.mxu0 0.0
        %905 = vmatprep.subr.mxu0 0.0
        %906 = vmatpush1.msra.mxu0 0.0
        %907 = vmatprep.subr.mxu0 0.0
        %908 = vmatpush1.msra.mxu0 0.0
        %909 = vmatprep.subr.mxu0 0.0
        %910 = vmatpush1.msra.mxu0 0.0
        %911 = vmatprep.subr.mxu0 0.0
        %912 = vmatpush1.msra.mxu0 0.0
        %913 = vmatprep.subr.mxu0 0.0
        %914 = vmatpush1.msra.mxu0 0.0
        %915 = vmatprep.subr.mxu0 0.0
        %916 = vmatpush1.msra.mxu0 0.0
        %917 = vmatprep.subr.mxu0 0.0
        %918 = vmatpush1.msra.mxu0 0.0
        %919 = vmatprep.subr.mxu0 0.0
        %920 = vmatpush1.msra.mxu0 0.0
        %921 = vmatprep.subr.mxu0 0.0
        %922 = vmatpush1.msra.mxu0 0.0
        %923 = vmatprep.subr.mxu0 0.0
        %924 = vmatpush1.msra.mxu0 0.0
        %925 = vmatprep.subr.mxu0 0.0
        %926 = vmatpush1.msra.mxu0 0.0
        %927 = vmatprep.subr.mxu0 0.0
        %928 = vmatpush1.msra.mxu0 0.0
        %929 = vmatprep.subr.mxu0 0.0
        %930 = vmatpush1.msra.mxu0 0.0
        %931 = vmatprep.subr.mxu0 0.0
        %932 = vmatpush1.msra.mxu0 0.0
        %933 = vmatprep.subr.mxu0 0.0
        %934 = vmatpush1.msra.mxu0 0.0
        %935 = vmatprep.subr.mxu0 0.0
        %936 = vmatpush1.msra.mxu0 0.0
        %937 = vmatprep.subr.mxu0 0.0
        %938 = vmatpush1.msra.mxu0 0.0
        %939 = vmatprep.subr.mxu0 0.0
        %940 = vmatpush1.msra.mxu0 0.0
        %941 = vmatprep.subr.mxu0 0.0
        %942 = vmatpush1.msra.mxu0 0.0
        %943 = vmatprep.subr.mxu0 0.0
        %944 = vmatpush1.msra.mxu0 0.0
        %945 = vmatprep.subr.mxu0 0.0
        %946 = vmatpush1.msra.mxu0 0.0
        %947 = vmatprep.subr.mxu0 0.0
        %948 = vmatpush1.msra.mxu0 0.0
        %949 = vmatprep.subr.mxu0 0.0
        %950 = vmatpush1.msra.mxu0 0.0
        %951 = vmatprep.subr.mxu0 0.0
        %952 = vmatpush1.msra.mxu0 0.0
        %953 = vmatprep.subr.mxu0 0.0
        %954 = vmatpush1.msra.mxu0 0.0
        %955 = vmatprep.mubr.f32.mxu0 0.0
        %956 = vmatmul.mubr.f32.gmra.mrb[0].mxu0 %v883
        %v957 = vpop.f32.mrb[0].mxu0
        %v958 = vadd.f32 0.0, %v957
        %v959 = vpop.f32.mrb[0].mxu0
        %v960 = vadd.f32 0.0, %v959
        %961 = vdwg.mxu0
        %v962 = vadd.f32 %v856, %v958
        %v963 = vadd.f32 %v857, %v960
        %964 = vrot.lane.b32.xlu0 %v244, 112
        %v965 = vpop.permute.xlu0 %964
        %966 = vrot.lane.b32.xlu0 %v246, 112
        %v967 = vpop.permute.xlu0 %966
        %vm968 = vcmp.lt.s32.totalorder %v253, 112
        %v969 = vsel %vm968, %v965, %v967
        %v970 = vsel %vm968, %v967, %v965
        %s971 = scalar_lea.vmem %s2, 14
        %v972 = vld [vmem:[%s971] sm:$0x3]
        %v974 = vlaneseq
        %v975 = vshrl.u32 %v974, 7
        %v976 = vsub.s32 0, %v975
        %v977 = vrot.slane %v972, %v976
        %v978 = vlaneseq
        %v979 = vshrl.u32 %v978, 7
        %v980 = vsub.s32 1, %v979
        %v981 = vrot.slane %v972, %v980
        %v984 = vmul.f32 %v969, %v977
        %v985 = vmul.f32 %v970, %v981
        %s986 = scalar_lea.vmem %s234, 56
        %v987 = vld [vmem:[%s986] sm:$0xff]
        %v989 = vsel %vm296, %v987, 0
        %v992 = vsel %vm300, %v984, 0
        %v995 = vsel %vm300, %v985, 0
        %997 = vmatprep.subr.mxu0 %v995
        %998 = vmatpush1.msra.mxu0 %v992
        %999 = vmatprep.subr.mxu0 0.0
        %1000 = vmatpush1.msra.mxu0 0.0
        %1001 = vmatprep.subr.mxu0 0.0
        %1002 = vmatpush1.msra.mxu0 0.0
        %1003 = vmatprep.subr.mxu0 0.0
        %1004 = vmatpush1.msra.mxu0 0.0
        %1005 = vmatprep.subr.mxu0 0.0
        %1006 = vmatpush1.msra.mxu0 0.0
        %1007 = vmatprep.subr.mxu0 0.0
        %1008 = vmatpush1.msra.mxu0 0.0
        %1009 = vmatprep.subr.mxu0 0.0
        %1010 = vmatpush1.msra.mxu0 0.0
        %1011 = vmatprep.subr.mxu0 0.0
        %1012 = vmatpush1.msra.mxu0 0.0
        %1013 = vmatprep.subr.mxu0 0.0
        %1014 = vmatpush1.msra.mxu0 0.0
        %1015 = vmatprep.subr.mxu0 0.0
        %1016 = vmatpush1.msra.mxu0 0.0
        %1017 = vmatprep.subr.mxu0 0.0
        %1018 = vmatpush1.msra.mxu0 0.0
        %1019 = vmatprep.subr.mxu0 0.0
        %1020 = vmatpush1.msra.mxu0 0.0
        %1021 = vmatprep.subr.mxu0 0.0
        %1022 = vmatpush1.msra.mxu0 0.0
        %1023 = vmatprep.subr.mxu0 0.0
        %1024 = vmatpush1.msra.mxu0 0.0
        %1025 = vmatprep.subr.mxu0 0.0
        %1026 = vmatpush1.msra.mxu0 0.0
        %1027 = vmatprep.subr.mxu0 0.0
        %1028 = vmatpush1.msra.mxu0 0.0
        %1029 = vmatprep.subr.mxu0 0.0
        %1030 = vmatpush1.msra.mxu0 0.0
        %1031 = vmatprep.subr.mxu0 0.0
        %1032 = vmatpush1.msra.mxu0 0.0
        %1033 = vmatprep.subr.mxu0 0.0
        %1034 = vmatpush1.msra.mxu0 0.0
        %1035 = vmatprep.subr.mxu0 0.0
        %1036 = vmatpush1.msra.mxu0 0.0
        %1037 = vmatprep.subr.mxu0 0.0
        %1038 = vmatpush1.msra.mxu0 0.0
        %1039 = vmatprep.subr.mxu0 0.0
        %1040 = vmatpush1.msra.mxu0 0.0
        %1041 = vmatprep.subr.mxu0 0.0
        %1042 = vmatpush1.msra.mxu0 0.0
        %1043 = vmatprep.subr.mxu0 0.0
        %1044 = vmatpush1.msra.mxu0 0.0
        %1045 = vmatprep.subr.mxu0 0.0
        %1046 = vmatpush1.msra.mxu0 0.0
        %1047 = vmatprep.subr.mxu0 0.0
        %1048 = vmatpush1.msra.mxu0 0.0
        %1049 = vmatprep.subr.mxu0 0.0
        %1050 = vmatpush1.msra.mxu0 0.0
        %1051 = vmatprep.subr.mxu0 0.0
        %1052 = vmatpush1.msra.mxu0 0.0
        %1053 = vmatprep.subr.mxu0 0.0
        %1054 = vmatpush1.msra.mxu0 0.0
        %1055 = vmatprep.subr.mxu0 0.0
        %1056 = vmatpush1.msra.mxu0 0.0
        %1057 = vmatprep.subr.mxu0 0.0
        %1058 = vmatpush1.msra.mxu0 0.0
        %1059 = vmatprep.subr.mxu0 0.0
        %1060 = vmatpush1.msra.mxu0 0.0
        %1061 = vmatprep.mubr.f32.mxu0 0.0
        %1062 = vmatmul.mubr.f32.gmra.mrb[0].mxu0 %v989
        %v1063 = vpop.f32.mrb[0].mxu0
        %v1064 = vadd.f32 0.0, %v1063
        %v1065 = vpop.f32.mrb[0].mxu0
        %v1066 = vadd.f32 0.0, %v1065
        %1067 = vdwg.mxu0
        %v1068 = vadd.f32 %v962, %v1064
        %v1069 = vadd.f32 %v963, %v1066
        %1070 = vrot.lane.b32.xlu0 %v244, 111
        %v1071 = vpop.permute.xlu0 %1070
        %1072 = vrot.lane.b32.xlu0 %v246, 111
        %v1073 = vpop.permute.xlu0 %1072
        %vm1074 = vcmp.lt.s32.totalorder %v253, 111
        %v1075 = vsel %vm1074, %v1071, %v1073
        %v1076 = vsel %vm1074, %v1073, %v1071
        %s1077 = scalar_lea.vmem %s2, 16
        %v1078 = vld [vmem:[%s1077] sm:$0x3]
        %v1080 = vlaneseq
        %v1081 = vshrl.u32 %v1080, 7
        %v1082 = vsub.s32 0, %v1081
        %v1083 = vrot.slane %v1078, %v1082
        %v1084 = vlaneseq
        %v1085 = vshrl.u32 %v1084, 7
        %v1086 = vsub.s32 1, %v1085
        %v1087 = vrot.slane %v1078, %v1086
        %v1090 = vmul.f32 %v1075, %v1083
        %v1091 = vmul.f32 %v1076, %v1087
        %s1092 = scalar_lea.vmem %s234, 64
        %v1093 = vld [vmem:[%s1092] sm:$0xff]
        %v1095 = vsel %vm296, %v1093, 0
        %v1098 = vsel %vm300, %v1090, 0
        %v1101 = vsel %vm300, %v1091, 0
        %1103 = vmatprep.subr.mxu0 %v1101
        %1104 = vmatpush1.msra.mxu0 %v1098
        %1105 = vmatprep.subr.mxu0 0.0
        %1106 = vmatpush1.msra.mxu0 0.0
        %1107 = vmatprep.subr.mxu0 0.0
        %1108 = vmatpush1.msra.mxu0 0.0
        %1109 = vmatprep.subr.mxu0 0.0
        %1110 = vmatpush1.msra.mxu0 0.0
        %1111 = vmatprep.subr.mxu0 0.0
        %1112 = vmatpush1.msra.mxu0 0.0
        %1113 = vmatprep.subr.mxu0 0.0
        %1114 = vmatpush1.msra.mxu0 0.0
        %1115 = vmatprep.subr.mxu0 0.0
        %1116 = vmatpush1.msra.mxu0 0.0
        %1117 = vmatprep.subr.mxu0 0.0
        %1118 = vmatpush1.msra.mxu0 0.0
        %1119 = vmatprep.subr.mxu0 0.0
        %1120 = vmatpush1.msra.mxu0 0.0
        %1121 = vmatprep.subr.mxu0 0.0
        %1122 = vmatpush1.msra.mxu0 0.0
        %1123 = vmatprep.subr.mxu0 0.0
        %1124 = vmatpush1.msra.mxu0 0.0
        %1125 = vmatprep.subr.mxu0 0.0
        %1126 = vmatpush1.msra.mxu0 0.0
        %1127 = vmatprep.subr.mxu0 0.0
        %1128 = vmatpush1.msra.mxu0 0.0
        %1129 = vmatprep.subr.mxu0 0.0
        %1130 = vmatpush1.msra.mxu0 0.0
        %1131 = vmatprep.subr.mxu0 0.0
        %1132 = vmatpush1.msra.mxu0 0.0
        %1133 = vmatprep.subr.mxu0 0.0
        %1134 = vmatpush1.msra.mxu0 0.0
        %1135 = vmatprep.subr.mxu0 0.0
        %1136 = vmatpush1.msra.mxu0 0.0
        %1137 = vmatprep.subr.mxu0 0.0
        %1138 = vmatpush1.msra.mxu0 0.0
        %1139 = vmatprep.subr.mxu0 0.0
        %1140 = vmatpush1.msra.mxu0 0.0
        %1141 = vmatprep.subr.mxu0 0.0
        %1142 = vmatpush1.msra.mxu0 0.0
        %1143 = vmatprep.subr.mxu0 0.0
        %1144 = vmatpush1.msra.mxu0 0.0
        %1145 = vmatprep.subr.mxu0 0.0
        %1146 = vmatpush1.msra.mxu0 0.0
        %1147 = vmatprep.subr.mxu0 0.0
        %1148 = vmatpush1.msra.mxu0 0.0
        %1149 = vmatprep.subr.mxu0 0.0
        %1150 = vmatpush1.msra.mxu0 0.0
        %1151 = vmatprep.subr.mxu0 0.0
        %1152 = vmatpush1.msra.mxu0 0.0
        %1153 = vmatprep.subr.mxu0 0.0
        %1154 = vmatpush1.msra.mxu0 0.0
        %1155 = vmatprep.subr.mxu0 0.0
        %1156 = vmatpush1.msra.mxu0 0.0
        %1157 = vmatprep.subr.mxu0 0.0
        %1158 = vmatpush1.msra.mxu0 0.0
        %1159 = vmatprep.subr.mxu0 0.0
        %1160 = vmatpush1.msra.mxu0 0.0
        %1161 = vmatprep.subr.mxu0 0.0
        %1162 = vmatpush1.msra.mxu0 0.0
        %1163 = vmatprep.subr.mxu0 0.0
        %1164 = vmatpush1.msra.mxu0 0.0
        %1165 = vmatprep.subr.mxu0 0.0
        %1166 = vmatpush1.msra.mxu0 0.0
        %1167 = vmatprep.mubr.f32.mxu0 0.0
        %1168 = vmatmul.mubr.f32.gmra.mrb[0].mxu0 %v1095
        %v1169 = vpop.f32.mrb[0].mxu0
        %v1170 = vadd.f32 0.0, %v1169
        %v1171 = vpop.f32.mrb[0].mxu0
        %v1172 = vadd.f32 0.0, %v1171
        %1173 = vdwg.mxu0
        %v1174 = vadd.f32 %v1068, %v1170
        %v1175 = vadd.f32 %v1069, %v1172
        %v1176 = vld [vmem:[%s238] sm:$0xff]
        %1178 = vset.pattern.permute.xlu0 0
        %1179 = vperm.xlu0 %1178, %v1176
        %v1180 = vpop.permute.xlu0 %1179
        %v1182 = vadd.f32 %v1174, %v1180
        %v1183 = vadd.f32 %v1175, %v1180
        %v1184 = vmax.f32 %v1182, 0.0
        %v1185 = vmax.f32 %v1183, 0.0
        %1186 = vst [vmem:[%s230] sm:$0xff] %v1184
        %1187 = vst [vmem:[%s230 + $0x8] sm:$0xff] %v1185
        %s1188 = sand.u32 %s139, 1
        %s1189 = scalar_lea.sflag [#allocation3], %s1188
        %s1190 = sand.u32 %s139, 1
        %s1191 = smul.addr %s1190, 16
        %s1192 = scalar_lea.vmem [#allocation2], %s1191
        // Predicated region
        $region37: #{tpu_custom_call.1} parent=35 // pred_check
          %p1193 = pneg %p149
        $region38: #{tpu_custom_call.1} parent=35 // pred_check_branch
          %1195 = sbr.rel (%p1193) target = $region40
        $region39: #{tpu_custom_call.1} parent=35 // pred_region
          %s1197 = ssub.s32 256, 256
          %1198 = vsyncadd %s1189, %s1197
          %s1199 = smul.addr %s23, 2
          %s1200 = smul.addr %s22, 2
          %s1201 = sadd.s32 %s1199, %s1200
          %s1202 = smul.addr %s1201, 128
          %s1203 = scalar_lea.hbm %s4, %s1202
          %s1205 = sshll.u32 %s1192, 4
          %s1206 = int_to_ptr.vmem [resolvable:$true] %s1205
          %1208 = dma.vmem_to_hbm [thread:$0]  %s1206, 256, %s1203, %s1189
        $region40: #{tpu_custom_call.1} parent=35 // pred_fallthru
          _
      $region36: #{tpu_custom_call.1} parent=5 // pred_fallthru
        _
      %p1209 = scmp.le.s32.totalorder 2, %s13
      // Predicated region
      $region41: #{tpu_custom_call.1} parent=5 // pred_check
        %p1210 = pneg %p1209
      $region42: #{tpu_custom_call.1} parent=5 // pred_check_branch
        %1212 = sbr.rel (%p1210) target = $region44
      $region43: #{tpu_custom_call.1} parent=5 // pred_region
        %s1213 = ssub.s32 %s13, 2
        // Predicated region
        $region45: #{tpu_custom_call.1} parent=43 // pred_check
          %p1214 = pneg %p155
        $region46: #{tpu_custom_call.1} parent=43 // pred_check_branch
          %1216 = sbr.rel (%p1214) target = $region48
        $region47: #{tpu_custom_call.1} parent=43 // pred_region
          %s1217 = sand.u32 %s140, 1
          %s1218 = scalar_lea.sflag [#allocation3], %s1217
          %s1219 = sand.u32 %s140, 1
          %s1220 = smul.addr %s1219, 16
          %s1221 = scalar_lea.vmem [#allocation2], %s1220
          %1222 = dma.done %s1218, 256
        $region48: #{tpu_custom_call.1} parent=43 // pred_fallthru
          _
      $region44: #{tpu_custom_call.1} parent=5 // pred_fallthru
        _
    $region6: #{tpu_custom_call.1} parent=1 // loop_footer
      %s17 = sadd.s32 1, %s13
    $region7: #{tpu_custom_call.1} parent=1 // loop_footer_branch
      %12 = sbr.rel target = $region3
    $region8: #{tpu_custom_call.1} parent=1 // loop_exit
      _
    %1223 = vsyncpa [#allocation3], 1
    %s1224 = scalar_lea.sflag [#allocation3], 1
    %1225 = vsyncpa %s1224, 1

</llo_original>
